<compile_context>
chip_gen: v5e
topology: v5e:2x2
jax: 0.10.0
libtpu: 0.0.40
codegen_flags: <defaults>
</compile_context>

<pallas_src>
import functools

import jax
import jax.numpy as jnp
from jax.experimental import pallas as pl
from jax.experimental.pallas import tpu as pltpu

HALF = 200          # hardcoded split point from `x[:, :200]` in the PyTorch forward
INPUT_SIZE = 2 * HALF
EPS = 1e-5          # nn.BatchNorm1d default eps


def _round_up(n, m):
    return ((n + m - 1) // m) * m


def nn_kernel(org_ref, new_ref, a_ref, b_ref, c_ref, w2t_ref, b2_ref, out_ref,
              *, hidden_dim):
    """Fused (folded-BN + fc1 + ReLU) * w2 accumulate + sigmoid, per batch tile.

    org_ref : (TN, 200) f32 VMEM   raw x[:, :200] tile
    new_ref : (TN, 200) f32 VMEM   raw x[:, 200:] tile
    a_ref   : (H, 200)  f32 VMEM   A[h,f] = w1[h,0] * bn_scale[f]
    b_ref   : (H, 200)  f32 VMEM   B[h,f] = w1[h,1] * bn_scale[200+f]
    c_ref   : (H, 200)  f32 VMEM   C[h,f] = w1[h,0]*bn_shift[f] + w1[h,1]*bn_shift[200+f] + b1[h]
    w2t_ref : (H, 200)  f32 VMEM   w2t[h,f] = W2[0, f*H + h]
    b2_ref  : (1, 1)    f32 VMEM
    out_ref : (TN, 1)   f32 VMEM
    """
    org = org_ref[...]                               # (TN, 200)
    new = new_ref[...]                               # (TN, 200)

    acc2d = jnp.zeros_like(org)                      # (TN, 200) f32 accumulator
    # Static unroll: hidden_dim is small for this module.
    # (For hidden_dim >> 16, switch to lax.fori_loop with acc2d as the carry to
    #  bound live ranges of the per-iteration (TN,200) temporaries.)
    for h in range(hidden_dim):
        a = a_ref[pl.ds(h, 1), :]                    # (1, 200) rows broadcast over sublanes
        b = b_ref[pl.ds(h, 1), :]
        c = c_ref[pl.ds(h, 1), :]
        w = w2t_ref[pl.ds(h, 1), :]
        yh = jnp.maximum(org * a + new * b + c, 0.0)   # (TN, 200), pure VPU
        acc2d = acc2d + yh * w

    # Single feature reduction per tile (instead of one per hidden unit).
    acc = jnp.sum(acc2d, axis=1, keepdims=True)      # (TN, 1)
    out_ref[...] = jax.nn.sigmoid(acc + b2_ref[...])


def nn_forward(x, gamma, beta, w1, b1, w2, b2, *, block_n=1024):
    """Wrapper: BN-stat + parameter folding (glue) + tiled pallas_call."""
    n, d = x.shape
    assert d == INPUT_SIZE, "forward slices at column 200, so input_size must be 400"
    assert block_n % 8 == 0
    hidden_dim = w1.shape[0]
    x = x.astype(jnp.float32)

    # --- BatchNorm1d training-mode statistics over the FULL batch (wrapper-side
    #     XLA reduction so the Pallas kernel can tile over N without changing
    #     BatchNorm semantics). ---
    mean = jnp.mean(x, axis=0)                                   # (400,)
    var = jnp.mean((x - mean) ** 2, axis=0)                      # biased, as PyTorch normalizes
    scale = gamma * jax.lax.rsqrt(var + EPS)                     # (400,)
    shift = beta - mean * scale                                  # (400,)

    s_org, s_new = scale[:HALF], scale[HALF:]
    t_org, t_new = shift[:HALF], shift[HALF:]

    # Fold BN + fc1 into per-hidden-unit tables of shape (H, 200):
    #   pre_act[n,f,h] = org_raw*A[h,f] + new_raw*B[h,f] + C[h,f]
    A = w1[:, 0:1] * s_org[None, :]                              # (H, 200)
    B = w1[:, 1:2] * s_new[None, :]                              # (H, 200)
    C = w1[:, 0:1] * t_org[None, :] + w1[:, 1:2] * t_new[None, :] + b1[:, None]

    # fc2 weight re-layout: reshape(N, -1) is f-major / h-minor, so
    # W2[0, f*H + h] -> w2t[h, f].
    w2t = jnp.transpose(jnp.reshape(w2, (HALF, hidden_dim)))     # (H, 200)

    # Column split done in the wrapper (200 is not a multiple of 128; slicing
    # inside the kernel would force a cross-lane re-layout).
    org = x[:, :HALF]
    new = x[:, HALF:]

    # Batch tiling: pad N up to a multiple of the tile so every block is full.
    tn = min(block_n, _round_up(n, 8))
    n_pad = _round_up(n, tn)
    if n_pad != n:
        pad = ((0, n_pad - n), (0, 0))
        org = jnp.pad(org, pad)
        new = jnp.pad(new, pad)

    grid = (n_pad // tn,)
    param_spec = pl.BlockSpec((hidden_dim, HALF), lambda i: (0, 0))

    out = pl.pallas_call(
        functools.partial(nn_kernel, hidden_dim=hidden_dim),
        out_shape=jax.ShapeDtypeStruct((n_pad, 1), jnp.float32),
        grid=grid,
        in_specs=[
            pl.BlockSpec((tn, HALF), lambda i: (i, 0)),          # org tile
            pl.BlockSpec((tn, HALF), lambda i: (i, 0)),          # new tile
            param_spec,                                          # A
            param_spec,                                          # B
            param_spec,                                          # C
            param_spec,                                          # w2t
            pl.BlockSpec((1, 1), lambda i: (0, 0)),              # b2
        ],
        out_specs=pl.BlockSpec((tn, 1), lambda i: (i, 0)),
        compiler_params=pltpu.CompilerParams(
            dimension_semantics=("parallel",)),
    )(org, new, A, B, C, w2t, b2.reshape(1, 1))

    return out[:n, 0]                                            # .view(-1)


def nn_reference(x, gamma, beta, w1, b1, w2, b2):
    """Pure-JAX reference mirroring the PyTorch forward exactly."""
    n = x.shape[0]
    mean = jnp.mean(x, axis=0, keepdims=True)
    var = jnp.mean((x - mean) ** 2, axis=0, keepdims=True)
    xh = (x - mean) / jnp.sqrt(var + EPS) * gamma + beta
    org = xh[:, :HALF][:, :, None]
    new = xh[:, HALF:][:, :, None]
    s = jnp.concatenate([org, new], axis=2)                      # (N, 200, 2)
    y = jax.nn.relu(jnp.einsum("nfi,hi->nfh", s, w1) + b1)       # (N, 200, H)
    yf = y.reshape(n, -1)
    return jax.nn.sigmoid(yf @ w2.T + b2).reshape(-1)


if __name__ == "__main__":
    hidden_dim = 8

    key = jax.random.PRNGKey(0)
    kx, kg, kb, kw1, kb1, kw2, kb2 = jax.random.split(key, 7)

    # BatchNorm1d affine params (deterministic synthetic init)
    gamma = 1.0 + 0.1 * jax.random.normal(kg, (INPUT_SIZE,), jnp.float32)
    beta = 0.1 * jax.random.normal(kb, (INPUT_SIZE,), jnp.float32)
    # fc1: Linear(2, hidden_dim)  -> weight (H, 2), bias (H,)
    w1 = 0.5 * jax.random.normal(kw1, (hidden_dim, 2), jnp.float32)
    b1 = 0.1 * jax.random.normal(kb1, (hidden_dim,), jnp.float32)
    # fc2: Linear(HALF * hidden_dim, 1) -> weight (1, 200*H), bias (1,)
    w2 = 0.05 * jax.random.normal(kw2, (1, HALF * hidden_dim), jnp.float32)
    b2 = 0.1 * jax.random.normal(kb2, (1,), jnp.float32)

    # Test 1: tiny batch (single padded tile).
    N1 = 4
    x1 = jax.random.normal(kx, (N1, INPUT_SIZE), jnp.float32)
    out1 = jax.block_until_ready(nn_forward(x1, gamma, beta, w1, b1, w2, b2))
    ref1 = nn_reference(x1, gamma, beta, w1, b1, w2, b2)
    assert out1.shape == (N1,)
    assert jnp.allclose(out1, ref1, atol=1e-5, rtol=1e-5), (out1, ref1)

    # Test 2: exercises a multi-step grid (3 tiles) plus a padded last tile.
    N2 = 20
    x2 = jax.random.normal(jax.random.PRNGKey(1), (N2, INPUT_SIZE), jnp.float32)
    out2 = jax.block_until_ready(
        nn_forward(x2, gamma, beta, w1, b1, w2, b2, block_n=8))
    ref2 = nn_reference(x2, gamma, beta, w1, b1, w2, b2)
    assert out2.shape == (N2,)
    assert jnp.allclose(out2, ref2, atol=1e-5, rtol=1e-5), (out2, ref2)

    print("KERNEL_OK")
</pallas_src>

<mosaic_0001>
module attributes {stable_mosaic.version = 11 : i64} {
  func.func @nn_kernel(%arg0: i32, %arg1: memref<8x200xf32, #tpu.memory_space<vmem>>, %arg2: memref<8x200xf32, #tpu.memory_space<vmem>>, %arg3: memref<8x200xf32, #tpu.memory_space<vmem>>, %arg4: memref<8x200xf32, #tpu.memory_space<vmem>>, %arg5: memref<8x200xf32, #tpu.memory_space<vmem>>, %arg6: memref<8x200xf32, #tpu.memory_space<vmem>>, %arg7: memref<1x1xf32, #tpu.memory_space<vmem>>, %arg8: memref<8x1xf32, #tpu.memory_space<vmem>>) attributes {dimension_semantics = [#tpu.dimension_semantics<parallel>], iteration_bounds = array<i64: 1>, scalar_prefetch = 0 : i64, scratch_operands = 0 : i64, tpu.core_type = #tpu.core_type<tc>, window_params = [{transform_indices = @transform_0, window_bounds = array<i64: 8, 200>}, {transform_indices = @transform_1, window_bounds = array<i64: 8, 200>}, {pipeline_mode = #tpu.pipeline_mode<synchronous>, transform_indices = @transform_2, window_bounds = array<i64: 8, 200>}, {pipeline_mode = #tpu.pipeline_mode<synchronous>, transform_indices = @transform_3, window_bounds = array<i64: 8, 200>}, {pipeline_mode = #tpu.pipeline_mode<synchronous>, transform_indices = @transform_4, window_bounds = array<i64: 8, 200>}, {pipeline_mode = #tpu.pipeline_mode<synchronous>, transform_indices = @transform_5, window_bounds = array<i64: 8, 200>}, {pipeline_mode = #tpu.pipeline_mode<synchronous>, transform_indices = @transform_6, window_bounds = array<i64: 1, 1>}, {transform_indices = @transform_7, window_bounds = array<i64: 8, 1>}]} {
    %c0 = arith.constant 0 : index
    %c0_0 = arith.constant 0 : index
    %0 = vector.load %arg1[%c0, %c0_0] : memref<8x200xf32, #tpu.memory_space<vmem>>, vector<8x200xf32>
    %c0_1 = arith.constant 0 : index
    %c0_2 = arith.constant 0 : index
    %1 = vector.load %arg2[%c0_1, %c0_2] : memref<8x200xf32, #tpu.memory_space<vmem>>, vector<8x200xf32>
    %cst = arith.constant 0.000000e+00 : f32
    %2 = vector.broadcast %cst : f32 to vector<8x200xf32>
    %c0_3 = arith.constant 0 : index
    %c0_4 = arith.constant 0 : index
    %3 = vector.load %arg3[%c0_3, %c0_4] : memref<8x200xf32, #tpu.memory_space<vmem>>, vector<1x200xf32>
    %c0_5 = arith.constant 0 : index
    %c0_6 = arith.constant 0 : index
    %4 = vector.load %arg4[%c0_5, %c0_6] : memref<8x200xf32, #tpu.memory_space<vmem>>, vector<1x200xf32>
    %c0_7 = arith.constant 0 : index
    %c0_8 = arith.constant 0 : index
    %5 = vector.load %arg5[%c0_7, %c0_8] : memref<8x200xf32, #tpu.memory_space<vmem>>, vector<1x200xf32>
    %c0_9 = arith.constant 0 : index
    %c0_10 = arith.constant 0 : index
    %6 = vector.load %arg6[%c0_9, %c0_10] : memref<8x200xf32, #tpu.memory_space<vmem>>, vector<1x200xf32>
    %7 = vector.broadcast %3 : vector<1x200xf32> to vector<8x200xf32>
    %8 = arith.mulf %0, %7 : vector<8x200xf32>
    %9 = vector.broadcast %4 : vector<1x200xf32> to vector<8x200xf32>
    %10 = arith.mulf %1, %9 : vector<8x200xf32>
    %11 = arith.addf %8, %10 : vector<8x200xf32>
    %12 = vector.broadcast %5 : vector<1x200xf32> to vector<8x200xf32>
    %13 = arith.addf %11, %12 : vector<8x200xf32>
    %cst_11 = arith.constant 0.000000e+00 : f32
    %14 = vector.broadcast %cst_11 : f32 to vector<8x200xf32>
    %15 = arith.maximumf %13, %14 : vector<8x200xf32>
    %16 = vector.broadcast %6 : vector<1x200xf32> to vector<8x200xf32>
    %17 = arith.mulf %15, %16 : vector<8x200xf32>
    %18 = arith.addf %2, %17 : vector<8x200xf32>
    %c1 = arith.constant 1 : index
    %c0_12 = arith.constant 0 : index
    %19 = vector.load %arg3[%c1, %c0_12] : memref<8x200xf32, #tpu.memory_space<vmem>>, vector<1x200xf32>
    %c1_13 = arith.constant 1 : index
    %c0_14 = arith.constant 0 : index
    %20 = vector.load %arg4[%c1_13, %c0_14] : memref<8x200xf32, #tpu.memory_space<vmem>>, vector<1x200xf32>
    %c1_15 = arith.constant 1 : index
    %c0_16 = arith.constant 0 : index
    %21 = vector.load %arg5[%c1_15, %c0_16] : memref<8x200xf32, #tpu.memory_space<vmem>>, vector<1x200xf32>
    %c1_17 = arith.constant 1 : index
    %c0_18 = arith.constant 0 : index
    %22 = vector.load %arg6[%c1_17, %c0_18] : memref<8x200xf32, #tpu.memory_space<vmem>>, vector<1x200xf32>
    %23 = vector.broadcast %19 : vector<1x200xf32> to vector<8x200xf32>
    %24 = arith.mulf %0, %23 : vector<8x200xf32>
    %25 = vector.broadcast %20 : vector<1x200xf32> to vector<8x200xf32>
    %26 = arith.mulf %1, %25 : vector<8x200xf32>
    %27 = arith.addf %24, %26 : vector<8x200xf32>
    %28 = vector.broadcast %21 : vector<1x200xf32> to vector<8x200xf32>
    %29 = arith.addf %27, %28 : vector<8x200xf32>
    %cst_19 = arith.constant 0.000000e+00 : f32
    %30 = vector.broadcast %cst_19 : f32 to vector<8x200xf32>
    %31 = arith.maximumf %29, %30 : vector<8x200xf32>
    %32 = vector.broadcast %22 : vector<1x200xf32> to vector<8x200xf32>
    %33 = arith.mulf %31, %32 : vector<8x200xf32>
    %34 = arith.addf %18, %33 : vector<8x200xf32>
    %c2 = arith.constant 2 : index
    %c0_20 = arith.constant 0 : index
    %35 = vector.load %arg3[%c2, %c0_20] : memref<8x200xf32, #tpu.memory_space<vmem>>, vector<1x200xf32>
    %c2_21 = arith.constant 2 : index
    %c0_22 = arith.constant 0 : index
    %36 = vector.load %arg4[%c2_21, %c0_22] : memref<8x200xf32, #tpu.memory_space<vmem>>, vector<1x200xf32>
    %c2_23 = arith.constant 2 : index
    %c0_24 = arith.constant 0 : index
    %37 = vector.load %arg5[%c2_23, %c0_24] : memref<8x200xf32, #tpu.memory_space<vmem>>, vector<1x200xf32>
    %c2_25 = arith.constant 2 : index
    %c0_26 = arith.constant 0 : index
    %38 = vector.load %arg6[%c2_25, %c0_26] : memref<8x200xf32, #tpu.memory_space<vmem>>, vector<1x200xf32>
    %39 = vector.broadcast %35 : vector<1x200xf32> to vector<8x200xf32>
    %40 = arith.mulf %0, %39 : vector<8x200xf32>
    %41 = vector.broadcast %36 : vector<1x200xf32> to vector<8x200xf32>
    %42 = arith.mulf %1, %41 : vector<8x200xf32>
    %43 = arith.addf %40, %42 : vector<8x200xf32>
    %44 = vector.broadcast %37 : vector<1x200xf32> to vector<8x200xf32>
    %45 = arith.addf %43, %44 : vector<8x200xf32>
    %cst_27 = arith.constant 0.000000e+00 : f32
    %46 = vector.broadcast %cst_27 : f32 to vector<8x200xf32>
    %47 = arith.maximumf %45, %46 : vector<8x200xf32>
    %48 = vector.broadcast %38 : vector<1x200xf32> to vector<8x200xf32>
    %49 = arith.mulf %47, %48 : vector<8x200xf32>
    %50 = arith.addf %34, %49 : vector<8x200xf32>
    %c3 = arith.constant 3 : index
    %c0_28 = arith.constant 0 : index
    %51 = vector.load %arg3[%c3, %c0_28] : memref<8x200xf32, #tpu.memory_space<vmem>>, vector<1x200xf32>
    %c3_29 = arith.constant 3 : index
    %c0_30 = arith.constant 0 : index
    %52 = vector.load %arg4[%c3_29, %c0_30] : memref<8x200xf32, #tpu.memory_space<vmem>>, vector<1x200xf32>
    %c3_31 = arith.constant 3 : index
    %c0_32 = arith.constant 0 : index
    %53 = vector.load %arg5[%c3_31, %c0_32] : memref<8x200xf32, #tpu.memory_space<vmem>>, vector<1x200xf32>
    %c3_33 = arith.constant 3 : index
    %c0_34 = arith.constant 0 : index
    %54 = vector.load %arg6[%c3_33, %c0_34] : memref<8x200xf32, #tpu.memory_space<vmem>>, vector<1x200xf32>
    %55 = vector.broadcast %51 : vector<1x200xf32> to vector<8x200xf32>
    %56 = arith.mulf %0, %55 : vector<8x200xf32>
    %57 = vector.broadcast %52 : vector<1x200xf32> to vector<8x200xf32>
    %58 = arith.mulf %1, %57 : vector<8x200xf32>
    %59 = arith.addf %56, %58 : vector<8x200xf32>
    %60 = vector.broadcast %53 : vector<1x200xf32> to vector<8x200xf32>
    %61 = arith.addf %59, %60 : vector<8x200xf32>
    %cst_35 = arith.constant 0.000000e+00 : f32
    %62 = vector.broadcast %cst_35 : f32 to vector<8x200xf32>
    %63 = arith.maximumf %61, %62 : vector<8x200xf32>
    %64 = vector.broadcast %54 : vector<1x200xf32> to vector<8x200xf32>
    %65 = arith.mulf %63, %64 : vector<8x200xf32>
    %66 = arith.addf %50, %65 : vector<8x200xf32>
    %c4 = arith.constant 4 : index
    %c0_36 = arith.constant 0 : index
    %67 = vector.load %arg3[%c4, %c0_36] : memref<8x200xf32, #tpu.memory_space<vmem>>, vector<1x200xf32>
    %c4_37 = arith.constant 4 : index
    %c0_38 = arith.constant 0 : index
    %68 = vector.load %arg4[%c4_37, %c0_38] : memref<8x200xf32, #tpu.memory_space<vmem>>, vector<1x200xf32>
    %c4_39 = arith.constant 4 : index
    %c0_40 = arith.constant 0 : index
    %69 = vector.load %arg5[%c4_39, %c0_40] : memref<8x200xf32, #tpu.memory_space<vmem>>, vector<1x200xf32>
    %c4_41 = arith.constant 4 : index
    %c0_42 = arith.constant 0 : index
    %70 = vector.load %arg6[%c4_41, %c0_42] : memref<8x200xf32, #tpu.memory_space<vmem>>, vector<1x200xf32>
    %71 = vector.broadcast %67 : vector<1x200xf32> to vector<8x200xf32>
    %72 = arith.mulf %0, %71 : vector<8x200xf32>
    %73 = vector.broadcast %68 : vector<1x200xf32> to vector<8x200xf32>
    %74 = arith.mulf %1, %73 : vector<8x200xf32>
    %75 = arith.addf %72, %74 : vector<8x200xf32>
    %76 = vector.broadcast %69 : vector<1x200xf32> to vector<8x200xf32>
    %77 = arith.addf %75, %76 : vector<8x200xf32>
    %cst_43 = arith.constant 0.000000e+00 : f32
    %78 = vector.broadcast %cst_43 : f32 to vector<8x200xf32>
    %79 = arith.maximumf %77, %78 : vector<8x200xf32>
    %80 = vector.broadcast %70 : vector<1x200xf32> to vector<8x200xf32>
    %81 = arith.mulf %79, %80 : vector<8x200xf32>
    %82 = arith.addf %66, %81 : vector<8x200xf32>
    %c5 = arith.constant 5 : index
    %c0_44 = arith.constant 0 : index
    %83 = vector.load %arg3[%c5, %c0_44] : memref<8x200xf32, #tpu.memory_space<vmem>>, vector<1x200xf32>
    %c5_45 = arith.constant 5 : index
    %c0_46 = arith.constant 0 : index
    %84 = vector.load %arg4[%c5_45, %c0_46] : memref<8x200xf32, #tpu.memory_space<vmem>>, vector<1x200xf32>
    %c5_47 = arith.constant 5 : index
    %c0_48 = arith.constant 0 : index
    %85 = vector.load %arg5[%c5_47, %c0_48] : memref<8x200xf32, #tpu.memory_space<vmem>>, vector<1x200xf32>
    %c5_49 = arith.constant 5 : index
    %c0_50 = arith.constant 0 : index
    %86 = vector.load %arg6[%c5_49, %c0_50] : memref<8x200xf32, #tpu.memory_space<vmem>>, vector<1x200xf32>
    %87 = vector.broadcast %83 : vector<1x200xf32> to vector<8x200xf32>
    %88 = arith.mulf %0, %87 : vector<8x200xf32>
    %89 = vector.broadcast %84 : vector<1x200xf32> to vector<8x200xf32>
    %90 = arith.mulf %1, %89 : vector<8x200xf32>
    %91 = arith.addf %88, %90 : vector<8x200xf32>
    %92 = vector.broadcast %85 : vector<1x200xf32> to vector<8x200xf32>
    %93 = arith.addf %91, %92 : vector<8x200xf32>
    %cst_51 = arith.constant 0.000000e+00 : f32
    %94 = vector.broadcast %cst_51 : f32 to vector<8x200xf32>
    %95 = arith.maximumf %93, %94 : vector<8x200xf32>
    %96 = vector.broadcast %86 : vector<1x200xf32> to vector<8x200xf32>
    %97 = arith.mulf %95, %96 : vector<8x200xf32>
    %98 = arith.addf %82, %97 : vector<8x200xf32>
    %c6 = arith.constant 6 : index
    %c0_52 = arith.constant 0 : index
    %99 = vector.load %arg3[%c6, %c0_52] : memref<8x200xf32, #tpu.memory_space<vmem>>, vector<1x200xf32>
    %c6_53 = arith.constant 6 : index
    %c0_54 = arith.constant 0 : index
    %100 = vector.load %arg4[%c6_53, %c0_54] : memref<8x200xf32, #tpu.memory_space<vmem>>, vector<1x200xf32>
    %c6_55 = arith.constant 6 : index
    %c0_56 = arith.constant 0 : index
    %101 = vector.load %arg5[%c6_55, %c0_56] : memref<8x200xf32, #tpu.memory_space<vmem>>, vector<1x200xf32>
    %c6_57 = arith.constant 6 : index
    %c0_58 = arith.constant 0 : index
    %102 = vector.load %arg6[%c6_57, %c0_58] : memref<8x200xf32, #tpu.memory_space<vmem>>, vector<1x200xf32>
    %103 = vector.broadcast %99 : vector<1x200xf32> to vector<8x200xf32>
    %104 = arith.mulf %0, %103 : vector<8x200xf32>
    %105 = vector.broadcast %100 : vector<1x200xf32> to vector<8x200xf32>
    %106 = arith.mulf %1, %105 : vector<8x200xf32>
    %107 = arith.addf %104, %106 : vector<8x200xf32>
    %108 = vector.broadcast %101 : vector<1x200xf32> to vector<8x200xf32>
    %109 = arith.addf %107, %108 : vector<8x200xf32>
    %cst_59 = arith.constant 0.000000e+00 : f32
    %110 = vector.broadcast %cst_59 : f32 to vector<8x200xf32>
    %111 = arith.maximumf %109, %110 : vector<8x200xf32>
    %112 = vector.broadcast %102 : vector<1x200xf32> to vector<8x200xf32>
    %113 = arith.mulf %111, %112 : vector<8x200xf32>
    %114 = arith.addf %98, %113 : vector<8x200xf32>
    %c7 = arith.constant 7 : index
    %c0_60 = arith.constant 0 : index
    %115 = vector.load %arg3[%c7, %c0_60] : memref<8x200xf32, #tpu.memory_space<vmem>>, vector<1x200xf32>
    %c7_61 = arith.constant 7 : index
    %c0_62 = arith.constant 0 : index
    %116 = vector.load %arg4[%c7_61, %c0_62] : memref<8x200xf32, #tpu.memory_space<vmem>>, vector<1x200xf32>
    %c7_63 = arith.constant 7 : index
    %c0_64 = arith.constant 0 : index
    %117 = vector.load %arg5[%c7_63, %c0_64] : memref<8x200xf32, #tpu.memory_space<vmem>>, vector<1x200xf32>
    %c7_65 = arith.constant 7 : index
    %c0_66 = arith.constant 0 : index
    %118 = vector.load %arg6[%c7_65, %c0_66] : memref<8x200xf32, #tpu.memory_space<vmem>>, vector<1x200xf32>
    %119 = vector.broadcast %115 : vector<1x200xf32> to vector<8x200xf32>
    %120 = arith.mulf %0, %119 : vector<8x200xf32>
    %121 = vector.broadcast %116 : vector<1x200xf32> to vector<8x200xf32>
    %122 = arith.mulf %1, %121 : vector<8x200xf32>
    %123 = arith.addf %120, %122 : vector<8x200xf32>
    %124 = vector.broadcast %117 : vector<1x200xf32> to vector<8x200xf32>
    %125 = arith.addf %123, %124 : vector<8x200xf32>
    %cst_67 = arith.constant 0.000000e+00 : f32
    %126 = vector.broadcast %cst_67 : f32 to vector<8x200xf32>
    %127 = arith.maximumf %125, %126 : vector<8x200xf32>
    %128 = vector.broadcast %118 : vector<1x200xf32> to vector<8x200xf32>
    %129 = arith.mulf %127, %128 : vector<8x200xf32>
    %130 = arith.addf %114, %129 : vector<8x200xf32>
    %cst_68 = arith.constant dense<0.000000e+00> : vector<8xf32>
    %131 = vector.multi_reduction <add>, %130, %cst_68 [1] : vector<8x200xf32> to vector<8xf32>
    %132 = vector.shape_cast %131 : vector<8xf32> to vector<8x1xf32>
    %c0_69 = arith.constant 0 : index
    %c0_70 = arith.constant 0 : index
    %133 = vector.load %arg7[%c0_69, %c0_70] : memref<1x1xf32, #tpu.memory_space<vmem>>, vector<1x1xf32>
    %134 = vector.broadcast %133 : vector<1x1xf32> to vector<8x1xf32>
    %135 = arith.addf %132, %134 : vector<8x1xf32>
    %136 = arith.negf %135 : vector<8x1xf32>
    %137 = math.exp %136 : vector<8x1xf32>
    %cst_71 = arith.constant 1.000000e+00 : f32
    %138 = vector.broadcast %cst_71 : f32 to vector<8x1xf32>
    %139 = arith.addf %138, %137 : vector<8x1xf32>
    %140 = arith.divf %138, %139 : vector<8x1xf32>
    %c0_72 = arith.constant 0 : index
    %c0_73 = arith.constant 0 : index
    %141 = vector.load %arg8[%c0_72, %c0_73] : memref<8x1xf32, #tpu.memory_space<vmem>>, vector<8x1xf32>
    tpu.vector_store %arg8[%c0_72, %c0_73], %140 {strides = array<i32>} : memref<8x1xf32, #tpu.memory_space<vmem>>, vector<8x1xf32>,
    return
  }
  func.func @transform_0(%arg0: i32) -> (i32, i32) {
    %c0_i32 = arith.constant 0 : i32
    %c0_i32_0 = arith.constant 0 : i32
    return %arg0, %c0_i32 : i32, i32
  }
  func.func @transform_1(%arg0: i32) -> (i32, i32) {
    %c0_i32 = arith.constant 0 : i32
    %c0_i32_0 = arith.constant 0 : i32
    return %arg0, %c0_i32 : i32, i32
  }
  func.func @transform_2(%arg0: i32) -> (i32, i32) {
    %c0_i32 = arith.constant 0 : i32
    %c0_i32_0 = arith.constant 0 : i32
    %c0_i32_1 = arith.constant 0 : i32
    return %c0_i32, %c0_i32_0 : i32, i32
  }
  func.func @transform_3(%arg0: i32) -> (i32, i32) {
    %c0_i32 = arith.constant 0 : i32
    %c0_i32_0 = arith.constant 0 : i32
    %c0_i32_1 = arith.constant 0 : i32
    return %c0_i32, %c0_i32_0 : i32, i32
  }
  func.func @transform_4(%arg0: i32) -> (i32, i32) {
    %c0_i32 = arith.constant 0 : i32
    %c0_i32_0 = arith.constant 0 : i32
    %c0_i32_1 = arith.constant 0 : i32
    return %c0_i32, %c0_i32_0 : i32, i32
  }
  func.func @transform_5(%arg0: i32) -> (i32, i32) {
    %c0_i32 = arith.constant 0 : i32
    %c0_i32_0 = arith.constant 0 : i32
    %c0_i32_1 = arith.constant 0 : i32
    return %c0_i32, %c0_i32_0 : i32, i32
  }
  func.func @transform_6(%arg0: i32) -> (i32, i32) {
    %c0_i32 = arith.constant 0 : i32
    %c0_i32_0 = arith.constant 0 : i32
    %c0_i32_1 = arith.constant 0 : i32
    return %c0_i32, %c0_i32_0 : i32, i32
  }
  func.func @transform_7(%arg0: i32) -> (i32, i32) {
    %c0_i32 = arith.constant 0 : i32
    %c0_i32_0 = arith.constant 0 : i32
    return %arg0, %c0_i32 : i32, i32
  }
}

</mosaic_0001>

<llo_original>
// kernel: tpu_custom_call.1
$region0: #{tpu_custom_call.1}
  #allocation0 [shape = 'u32[]', space=smem, size = 0x4, offset = 0x4, fixed_abs, tag = 'smem constant byte address 0x4 - core index']
  #allocation1 [shape = 'u32[72,128]{1,0:T(1,128)}', space=vmem, size = 0x9000, scoped, tag = 'internal scratch']
  #allocation2 [shape = 'f32[1,1]{1,0:T(1,128)S(1)}', space=vmem, size = 0x200, scoped, tag = 'scoped memory for tpu_custom_call.1']
  %s0 = inlined_call_operand.hbm [shape: f32[8,200], index: 0, kind: input, shape index: {}]
  %s1 = inlined_call_operand.hbm [shape: f32[8,200], index: 1, kind: input, shape index: {}]
  %s2 = inlined_call_operand.hbm [shape: f32[8,200], index: 2, kind: input, shape index: {}]
  %s3 = inlined_call_operand.hbm [shape: f32[8,200], index: 3, kind: input, shape index: {}]
  %s4 = inlined_call_operand.hbm [shape: f32[8,200], index: 4, kind: input, shape index: {}]
  %s5 = inlined_call_operand.hbm [shape: f32[8,200], index: 5, kind: input, shape index: {}]
  %s6 = inlined_call_operand.<no memory space> [shape: f32[1,1], index: 6, kind: input, shape index: {}]
  %s7 = inlined_call_operand.vmem [shape: f32[8,1], index: 7, kind: output, shape index: {}]
  %s8 = sld [smem:[#allocation0]]
  $region62: #{tpu_custom_call.1} parent=0
    _
  %s10 = ssub.s32 1, %s8
  %s11 = scalar_select 0, %s10, %s8
  %v12 = vstv %s6
  %13 = vst [vmem:[#allocation2] sm:$0x1] %v12
  $region1: #{tpu_custom_call.1} parent=0
    #allocation3 [shape = 'u8[8192]{0}', space=vmem, size = 0x2000, scoped, tag = 'input window, operand 0, single buffered']
    #allocation4 [shape = 's32[1]{0}', space=sflag, size = 0x4, scoped, tag = 'scoped memory for tpu_custom_call.1']
    #allocation5 [shape = 'u8[8192]{0}', space=vmem, size = 0x2000, scoped, tag = 'input window, operand 1, single buffered']
    #allocation6 [shape = 's32[1]{0}', space=sflag, size = 0x4, scoped, tag = 'scoped memory for tpu_custom_call.1']
    #allocation7 [shape = 'u8[8192]{0}', space=vmem, size = 0x2000, scoped, tag = 'input window, operand 2, single buffered']
    #allocation8 [shape = 'u8[8192]{0}', space=vmem, size = 0x2000, scoped, tag = 'input window, operand 3, single buffered']
    #allocation9 [shape = 's32[1]{0}', space=sflag, size = 0x4, scoped, tag = 'scoped memory for tpu_custom_call.1']
    #allocation10 [shape = 'u8[8192]{0}', space=vmem, size = 0x2000, scoped, tag = 'input window, operand 4, single buffered']
    #allocation11 [shape = 'u8[8192]{0}', space=vmem, size = 0x2000, scoped, tag = 'input window, operand 5, single buffered']
    #allocation12 [shape = 's32[1]{0}', space=sflag, size = 0x4, scoped, tag = 'scoped memory for tpu_custom_call.1']
    %14 = vsyncpa [#allocation4], 0
    %15 = vsyncpa [#allocation6], 0
    %16 = vsyncpa [#allocation9], 0
    %17 = vsyncpa [#allocation12], 0
    // Predicated region
    $region2: #{tpu_custom_call.1} parent=1 // pred_check
      _
    $region3: #{tpu_custom_call.1} parent=1 // pred_check_branch
      %19 = sbr.rel (0) target = $region5
    $region4: #{tpu_custom_call.1} parent=1 // pred_region
      %21 = vsyncadd [#allocation4], 0
      %s23 = sshll.u32 %s0, 4
      %s24 = int_to_ptr.hbm [resolvable:$true] %s23
      %s25 = sshll.u32 [#allocation3], 4
      %s26 = int_to_ptr.vmem [resolvable:$true] %s25
      %28 = dma.hbm_to_vmem [thread:$0]  %s24, 256, %s26, [#allocation4]
    $region5: #{tpu_custom_call.1} parent=1 // pred_fallthru
      _
    // Predicated region
    $region6: #{tpu_custom_call.1} parent=1 // pred_check
      _
    $region7: #{tpu_custom_call.1} parent=1 // pred_check_branch
      %30 = sbr.rel (0) target = $region9
    $region8: #{tpu_custom_call.1} parent=1 // pred_region
      %32 = vsyncadd [#allocation6], 0
      %s34 = sshll.u32 %s1, 4
      %s35 = int_to_ptr.hbm [resolvable:$true] %s34
      %s36 = sshll.u32 [#allocation5], 4
      %s37 = int_to_ptr.vmem [resolvable:$true] %s36
      %39 = dma.hbm_to_vmem [thread:$0]  %s35, 256, %s37, [#allocation6]
    $region9: #{tpu_custom_call.1} parent=1 // pred_fallthru
      _
    // Predicated region
    $region10: #{tpu_custom_call.1} parent=1 // pred_check
      _
    $region11: #{tpu_custom_call.1} parent=1 // pred_check_branch
      %41 = sbr.rel (0) target = $region13
    $region12: #{tpu_custom_call.1} parent=1 // pred_region
      %43 = vsyncadd [#allocation6], 0
      %s45 = sshll.u32 %s2, 4
      %s46 = int_to_ptr.hbm [resolvable:$true] %s45
      %s47 = sshll.u32 [#allocation7], 4
      %s48 = int_to_ptr.vmem [resolvable:$true] %s47
      %50 = dma.hbm_to_vmem [thread:$0]  %s46, 256, %s48, [#allocation6]
    $region13: #{tpu_custom_call.1} parent=1 // pred_fallthru
      _
    // Predicated region
    $region14: #{tpu_custom_call.1} parent=1 // pred_check
      _
    $region15: #{tpu_custom_call.1} parent=1 // pred_check_branch
      %52 = sbr.rel (0) target = $region17
    $region16: #{tpu_custom_call.1} parent=1 // pred_region
      %54 = vsyncadd [#allocation9], 0
      %s56 = sshll.u32 %s3, 4
      %s57 = int_to_ptr.hbm [resolvable:$true] %s56
      %s58 = sshll.u32 [#allocation8], 4
      %s59 = int_to_ptr.vmem [resolvable:$true] %s58
      %61 = dma.hbm_to_vmem [thread:$0]  %s57, 256, %s59, [#allocation9]
    $region17: #{tpu_custom_call.1} parent=1 // pred_fallthru
      _
    // Predicated region
    $region18: #{tpu_custom_call.1} parent=1 // pred_check
      _
    $region19: #{tpu_custom_call.1} parent=1 // pred_check_branch
      %63 = sbr.rel (0) target = $region21
    $region20: #{tpu_custom_call.1} parent=1 // pred_region
      %65 = vsyncadd [#allocation9], 0
      %s67 = sshll.u32 %s4, 4
      %s68 = int_to_ptr.hbm [resolvable:$true] %s67
      %s69 = sshll.u32 [#allocation10], 4
      %s70 = int_to_ptr.vmem [resolvable:$true] %s69
      %72 = dma.hbm_to_vmem [thread:$0]  %s68, 256, %s70, [#allocation9]
    $region21: #{tpu_custom_call.1} parent=1 // pred_fallthru
      _
    // Predicated region
    $region22: #{tpu_custom_call.1} parent=1 // pred_check
      _
    $region23: #{tpu_custom_call.1} parent=1 // pred_check_branch
      %74 = sbr.rel (0) target = $region25
    $region24: #{tpu_custom_call.1} parent=1 // pred_region
      %76 = vsyncadd [#allocation12], 0
      %s78 = sshll.u32 %s5, 4
      %s79 = int_to_ptr.hbm [resolvable:$true] %s78
      %s80 = sshll.u32 [#allocation11], 4
      %s81 = int_to_ptr.vmem [resolvable:$true] %s80
      %83 = dma.hbm_to_vmem [thread:$0]  %s79, 256, %s81, [#allocation12]
    $region25: #{tpu_custom_call.1} parent=1 // pred_fallthru
      _
    // Predicated region
    $region26: #{tpu_custom_call.1} parent=1 // pred_check
      _
    $region27: #{tpu_custom_call.1} parent=1 // pred_check_branch
      %85 = sbr.rel (0) target = $region29
    $region28: #{tpu_custom_call.1} parent=1 // pred_region
      _
    $region29: #{tpu_custom_call.1} parent=1 // pred_fallthru
      _
    // Predicated region
    $region30: #{tpu_custom_call.1} parent=1 // pred_check
      _
    $region31: #{tpu_custom_call.1} parent=1 // pred_check_branch
      %87 = sbr.rel (0) target = $region33
    $region32: #{tpu_custom_call.1} parent=1 // pred_region
      %89 = dma.done [#allocation4], 256
    $region33: #{tpu_custom_call.1} parent=1 // pred_fallthru
      _
    // Predicated region
    $region34: #{tpu_custom_call.1} parent=1 // pred_check
      _
    $region35: #{tpu_custom_call.1} parent=1 // pred_check_branch
      %91 = sbr.rel (0) target = $region37
    $region36: #{tpu_custom_call.1} parent=1 // pred_region
      %93 = dma.done [#allocation6], 256
    $region37: #{tpu_custom_call.1} parent=1 // pred_fallthru
      _
    // Predicated region
    $region38: #{tpu_custom_call.1} parent=1 // pred_check
      _
    $region39: #{tpu_custom_call.1} parent=1 // pred_check_branch
      %95 = sbr.rel (0) target = $region41
    $region40: #{tpu_custom_call.1} parent=1 // pred_region
      %97 = dma.done [#allocation6], 256
    $region41: #{tpu_custom_call.1} parent=1 // pred_fallthru
      _
    // Predicated region
    $region42: #{tpu_custom_call.1} parent=1 // pred_check
      _
    $region43: #{tpu_custom_call.1} parent=1 // pred_check_branch
      %99 = sbr.rel (0) target = $region45
    $region44: #{tpu_custom_call.1} parent=1 // pred_region
      %101 = dma.done [#allocation9], 256
    $region45: #{tpu_custom_call.1} parent=1 // pred_fallthru
      _
    // Predicated region
    $region46: #{tpu_custom_call.1} parent=1 // pred_check
      _
    $region47: #{tpu_custom_call.1} parent=1 // pred_check_branch
      %103 = sbr.rel (0) target = $region49
    $region48: #{tpu_custom_call.1} parent=1 // pred_region
      %105 = dma.done [#allocation9], 256
    $region49: #{tpu_custom_call.1} parent=1 // pred_fallthru
      _
    // Predicated region
    $region50: #{tpu_custom_call.1} parent=1 // pred_check
      _
    $region51: #{tpu_custom_call.1} parent=1 // pred_check_branch
      %107 = sbr.rel (0) target = $region53
    $region52: #{tpu_custom_call.1} parent=1 // pred_region
      %109 = dma.done [#allocation12], 256
    $region53: #{tpu_custom_call.1} parent=1 // pred_fallthru
      _
    %v110 = vld [vmem:[#allocation3] sm:$0xff]
    %v111 = vld [vmem:[#allocation3 + $0x8] sm:$0xff]
    %v112 = vld [vmem:[#allocation5] sm:$0xff]
    %v113 = vld [vmem:[#allocation5 + $0x8] sm:$0xff]
    %v114 = vld [vmem:[#allocation7] ss:$8 sm:$0x3]
    %v115 = vld [vmem:[#allocation8] ss:$8 sm:$0x3]
    %v116 = vld [vmem:[#allocation10] ss:$8 sm:$0x3]
    %v117 = vld [vmem:[#allocation11] ss:$8 sm:$0x3]
    %v119 = vperm.slane %v114, 0
    %v120 = vperm.slane %v114, 1
    %v123 = vmul.f32 %v110, %v119
    %v124 = vmul.f32 %v111, %v120
    %v126 = vperm.slane %v115, 0
    %v127 = vperm.slane %v115, 1
    %v130 = vmul.f32 %v112, %v126
    %v131 = vmul.f32 %v113, %v127
    %v132 = vadd.f32 %v123, %v130
    %v133 = vadd.f32 %v124, %v131
    %v135 = vperm.slane %v116, 0
    %v136 = vperm.slane %v116, 1
    %v139 = vadd.f32 %v132, %v135
    %v140 = vadd.f32 %v133, %v136
    %v141 = vmax.f32 %v139, 0.0
    %v142 = vmax.f32 %v140, 0.0
    %v144 = vperm.slane %v117, 0
    %v145 = vperm.slane %v117, 1
    %v148 = vmul.f32 %v141, %v144
    %v149 = vmul.f32 %v142, %v145
    %v150 = vadd.f32 %v148, 0.0
    %v151 = vadd.f32 %v149, 0.0
    %s152 = scalar_lea.vmem [#allocation7], 1
    %v153 = vld [vmem:[%s152] ss:$8 sm:$0x3]
    %s154 = scalar_lea.vmem [#allocation8], 1
    %v155 = vld [vmem:[%s154] ss:$8 sm:$0x3]
    %s156 = scalar_lea.vmem [#allocation10], 1
    %v157 = vld [vmem:[%s156] ss:$8 sm:$0x3]
    %s158 = scalar_lea.vmem [#allocation11], 1
    %v159 = vld [vmem:[%s158] ss:$8 sm:$0x3]
    %v161 = vperm.slane %v153, 0
    %v162 = vperm.slane %v153, 1
    %v165 = vmul.f32 %v110, %v161
    %v166 = vmul.f32 %v111, %v162
    %v168 = vperm.slane %v155, 0
    %v169 = vperm.slane %v155, 1
    %v172 = vmul.f32 %v112, %v168
    %v173 = vmul.f32 %v113, %v169
    %v174 = vadd.f32 %v165, %v172
    %v175 = vadd.f32 %v166, %v173
    %v177 = vperm.slane %v157, 0
    %v178 = vperm.slane %v157, 1
    %v181 = vadd.f32 %v174, %v177
    %v182 = vadd.f32 %v175, %v178
    %v183 = vmax.f32 %v181, 0.0
    %v184 = vmax.f32 %v182, 0.0
    %v186 = vperm.slane %v159, 0
    %v187 = vperm.slane %v159, 1
    %v190 = vmul.f32 %v183, %v186
    %v191 = vmul.f32 %v184, %v187
    %v192 = vadd.f32 %v150, %v190
    %v193 = vadd.f32 %v151, %v191
    %s194 = scalar_lea.vmem [#allocation7], 2
    %v195 = vld [vmem:[%s194] ss:$8 sm:$0x3]
    %s196 = scalar_lea.vmem [#allocation8], 2
    %v197 = vld [vmem:[%s196] ss:$8 sm:$0x3]
    %s198 = scalar_lea.vmem [#allocation10], 2
    %v199 = vld [vmem:[%s198] ss:$8 sm:$0x3]
    %s200 = scalar_lea.vmem [#allocation11], 2
    %v201 = vld [vmem:[%s200] ss:$8 sm:$0x3]
    %v203 = vperm.slane %v195, 0
    %v204 = vperm.slane %v195, 1
    %v207 = vmul.f32 %v110, %v203
    %v208 = vmul.f32 %v111, %v204
    %v210 = vperm.slane %v197, 0
    %v211 = vperm.slane %v197, 1
    %v214 = vmul.f32 %v112, %v210
    %v215 = vmul.f32 %v113, %v211
    %v216 = vadd.f32 %v207, %v214
    %v217 = vadd.f32 %v208, %v215
    %v219 = vperm.slane %v199, 0
    %v220 = vperm.slane %v199, 1
    %v223 = vadd.f32 %v216, %v219
    %v224 = vadd.f32 %v217, %v220
    %v225 = vmax.f32 %v223, 0.0
    %v226 = vmax.f32 %v224, 0.0
    %v228 = vperm.slane %v201, 0
    %v229 = vperm.slane %v201, 1
    %v232 = vmul.f32 %v225, %v228
    %v233 = vmul.f32 %v226, %v229
    %v234 = vadd.f32 %v192, %v232
    %v235 = vadd.f32 %v193, %v233
    %s236 = scalar_lea.vmem [#allocation7], 3
    %v237 = vld [vmem:[%s236] ss:$8 sm:$0x3]
    %s238 = scalar_lea.vmem [#allocation8], 3
    %v239 = vld [vmem:[%s238] ss:$8 sm:$0x3]
    %s240 = scalar_lea.vmem [#allocation10], 3
    %v241 = vld [vmem:[%s240] ss:$8 sm:$0x3]
    %s242 = scalar_lea.vmem [#allocation11], 3
    %v243 = vld [vmem:[%s242] ss:$8 sm:$0x3]
    %v245 = vperm.slane %v237, 0
    %v246 = vperm.slane %v237, 1
    %v249 = vmul.f32 %v110, %v245
    %v250 = vmul.f32 %v111, %v246
    %v252 = vperm.slane %v239, 0
    %v253 = vperm.slane %v239, 1
    %v256 = vmul.f32 %v112, %v252
    %v257 = vmul.f32 %v113, %v253
    %v258 = vadd.f32 %v249, %v256
    %v259 = vadd.f32 %v250, %v257
    %v261 = vperm.slane %v241, 0
    %v262 = vperm.slane %v241, 1
    %v265 = vadd.f32 %v258, %v261
    %v266 = vadd.f32 %v259, %v262
    %v267 = vmax.f32 %v265, 0.0
    %v268 = vmax.f32 %v266, 0.0
    %v270 = vperm.slane %v243, 0
    %v271 = vperm.slane %v243, 1
    %v274 = vmul.f32 %v267, %v270
    %v275 = vmul.f32 %v268, %v271
    %v276 = vadd.f32 %v234, %v274
    %v277 = vadd.f32 %v235, %v275
    %s278 = scalar_lea.vmem [#allocation7], 4
    %v279 = vld [vmem:[%s278] ss:$8 sm:$0x3]
    %s280 = scalar_lea.vmem [#allocation8], 4
    %v281 = vld [vmem:[%s280] ss:$8 sm:$0x3]
    %s282 = scalar_lea.vmem [#allocation10], 4
    %v283 = vld [vmem:[%s282] ss:$8 sm:$0x3]
    %s284 = scalar_lea.vmem [#allocation11], 4
    %v285 = vld [vmem:[%s284] ss:$8 sm:$0x3]
    %v287 = vperm.slane %v279, 0
    %v288 = vperm.slane %v279, 1
    %v291 = vmul.f32 %v110, %v287
    %v292 = vmul.f32 %v111, %v288
    %v294 = vperm.slane %v281, 0
    %v295 = vperm.slane %v281, 1
    %v298 = vmul.f32 %v112, %v294
    %v299 = vmul.f32 %v113, %v295
    %v300 = vadd.f32 %v291, %v298
    %v301 = vadd.f32 %v292, %v299
    %v303 = vperm.slane %v283, 0
    %v304 = vperm.slane %v283, 1
    %v307 = vadd.f32 %v300, %v303
    %v308 = vadd.f32 %v301, %v304
    %v309 = vmax.f32 %v307, 0.0
    %v310 = vmax.f32 %v308, 0.0
    %v312 = vperm.slane %v285, 0
    %v313 = vperm.slane %v285, 1
    %v316 = vmul.f32 %v309, %v312
    %v317 = vmul.f32 %v310, %v313
    %v318 = vadd.f32 %v276, %v316
    %v319 = vadd.f32 %v277, %v317
    %s320 = scalar_lea.vmem [#allocation7], 5
    %v321 = vld [vmem:[%s320] ss:$8 sm:$0x3]
    %s322 = scalar_lea.vmem [#allocation8], 5
    %v323 = vld [vmem:[%s322] ss:$8 sm:$0x3]
    %s324 = scalar_lea.vmem [#allocation10], 5
    %v325 = vld [vmem:[%s324] ss:$8 sm:$0x3]
    %s326 = scalar_lea.vmem [#allocation11], 5
    %v327 = vld [vmem:[%s326] ss:$8 sm:$0x3]
    %v329 = vperm.slane %v321, 0
    %v330 = vperm.slane %v321, 1
    %v333 = vmul.f32 %v110, %v329
    %v334 = vmul.f32 %v111, %v330
    %v336 = vperm.slane %v323, 0
    %v337 = vperm.slane %v323, 1
    %v340 = vmul.f32 %v112, %v336
    %v341 = vmul.f32 %v113, %v337
    %v342 = vadd.f32 %v333, %v340
    %v343 = vadd.f32 %v334, %v341
    %v345 = vperm.slane %v325, 0
    %v346 = vperm.slane %v325, 1
    %v349 = vadd.f32 %v342, %v345
    %v350 = vadd.f32 %v343, %v346
    %v351 = vmax.f32 %v349, 0.0
    %v352 = vmax.f32 %v350, 0.0
    %v354 = vperm.slane %v327, 0
    %v355 = vperm.slane %v327, 1
    %v358 = vmul.f32 %v351, %v354
    %v359 = vmul.f32 %v352, %v355
    %v360 = vadd.f32 %v318, %v358
    %v361 = vadd.f32 %v319, %v359
    %s362 = scalar_lea.vmem [#allocation7], 6
    %v363 = vld [vmem:[%s362] ss:$8 sm:$0x3]
    %s364 = scalar_lea.vmem [#allocation8], 6
    %v365 = vld [vmem:[%s364] ss:$8 sm:$0x3]
    %s366 = scalar_lea.vmem [#allocation10], 6
    %v367 = vld [vmem:[%s366] ss:$8 sm:$0x3]
    %s368 = scalar_lea.vmem [#allocation11], 6
    %v369 = vld [vmem:[%s368] ss:$8 sm:$0x3]
    %v371 = vperm.slane %v363, 0
    %v372 = vperm.slane %v363, 1
    %v375 = vmul.f32 %v110, %v371
    %v376 = vmul.f32 %v111, %v372
    %v378 = vperm.slane %v365, 0
    %v379 = vperm.slane %v365, 1
    %v382 = vmul.f32 %v112, %v378
    %v383 = vmul.f32 %v113, %v379
    %v384 = vadd.f32 %v375, %v382
    %v385 = vadd.f32 %v376, %v383
    %v387 = vperm.slane %v367, 0
    %v388 = vperm.slane %v367, 1
    %v391 = vadd.f32 %v384, %v387
    %v392 = vadd.f32 %v385, %v388
    %v393 = vmax.f32 %v391, 0.0
    %v394 = vmax.f32 %v392, 0.0
    %v396 = vperm.slane %v369, 0
    %v397 = vperm.slane %v369, 1
    %v400 = vmul.f32 %v393, %v396
    %v401 = vmul.f32 %v394, %v397
    %v402 = vadd.f32 %v360, %v400
    %v403 = vadd.f32 %v361, %v401
    %s404 = scalar_lea.vmem [#allocation7], 7
    %v405 = vld [vmem:[%s404] ss:$8 sm:$0x3]
    %s406 = scalar_lea.vmem [#allocation8], 7
    %v407 = vld [vmem:[%s406] ss:$8 sm:$0x3]
    %s408 = scalar_lea.vmem [#allocation10], 7
    %v409 = vld [vmem:[%s408] ss:$8 sm:$0x3]
    %s410 = scalar_lea.vmem [#allocation11], 7
    %v411 = vld [vmem:[%s410] ss:$8 sm:$0x3]
    %v413 = vperm.slane %v405, 0
    %v414 = vperm.slane %v405, 1
    %v417 = vmul.f32 %v110, %v413
    %v418 = vmul.f32 %v111, %v414
    %v420 = vperm.slane %v407, 0
    %v421 = vperm.slane %v407, 1
    %v424 = vmul.f32 %v112, %v420
    %v425 = vmul.f32 %v113, %v421
    %v426 = vadd.f32 %v417, %v424
    %v427 = vadd.f32 %v418, %v425
    %v429 = vperm.slane %v409, 0
    %v430 = vperm.slane %v409, 1
    %v433 = vadd.f32 %v426, %v429
    %v434 = vadd.f32 %v427, %v430
    %v435 = vmax.f32 %v433, 0.0
    %v436 = vmax.f32 %v434, 0.0
    %v438 = vperm.slane %v411, 0
    %v439 = vperm.slane %v411, 1
    %v442 = vmul.f32 %v435, %v438
    %v443 = vmul.f32 %v436, %v439
    %v444 = vadd.f32 %v402, %v442
    %v445 = vadd.f32 %v403, %v443
    %vm446 = vcmask 588800
    %v447 = vsel %vm446, %v445, 0.0
    %v448 = vadd.f32 %v444, %v447
    %449 = vadd.xlane.f32.xlu0 %v448
    %v450 = vpop.xlane.xlu0 %449
    %v451 = vld [vmem:[#allocation2] sm:$0x1]
    %v453 = vperm.slane %v451, 0
    %v455 = vadd.f32 %v450, %v453
    %v456 = vxor.u32 %v455, 2147483648
    %v457 = vmul.f32 %v456, 1.442695
    %v458 = vpow.pop %v457
    %v459 = vadd.f32 %v458, 1.0
    %v460 = vrcp.pop %v459
    %v461 = vmul.f32 %v459, %v460
    %v462 = vsub.f32 1.0, %v461
    %v463 = vmul.f32 %v460, %v462
    %v464 = vadd.f32 %v460, %v463
    %vm465 = vweird.f32 %v459
    %vm466 = vweird.f32 %v460
    %vm467 = vmor %vm465, %vm466
    %v468 = vsel %vm467, %v460, %v464
    %v469 = vand.u32 2147483647, %v459
    %vm470 = vcmp.eq.f32.partialorder %v469, 8.507059e+37
    %v471 = vand.u32 %v459, 2147483648
    %v472 = vor.u32 1.1754944e-38, %v471
    %v473 = vsel %vm470, %v472, %v468
    %v474 = vmul.f32 1.0, %v473
    %vm475 = vcmask 7168
    %476 = vst.msk [vmem:[%s7] sm:$0xff] %vm475, %v474
    // Predicated region
    $region54: #{tpu_custom_call.1} parent=1 // pred_check
      _
    $region55: #{tpu_custom_call.1} parent=1 // pred_check_branch
      %478 = sbr.rel (0) target = $region57
    $region56: #{tpu_custom_call.1} parent=1 // pred_region
      _
    $region57: #{tpu_custom_call.1} parent=1 // pred_fallthru
      _
    // Predicated region
    $region58: #{tpu_custom_call.1} parent=1 // pred_check
      _
    $region59: #{tpu_custom_call.1} parent=1 // pred_check_branch
      %480 = sbr.rel (0) target = $region61
    $region60: #{tpu_custom_call.1} parent=1 // pred_region
      _
    $region61: #{tpu_custom_call.1} parent=1 // pred_fallthru
      _
    %481 = vsyncpa [#allocation4], 1
    %482 = vsyncpa [#allocation6], 1
    %483 = vsyncpa [#allocation9], 1
    %484 = vsyncpa [#allocation12], 1

</llo_original>
